<compile_context>
chip_gen: v6e
topology: v6e:2x2x1
jax: 0.10.0
libtpu: 0.0.40
codegen_flags: <defaults>
</compile_context>

<pallas_src>
import functools

import jax
import jax.numpy as jnp
from jax.experimental import pallas as pl
from jax.experimental.pallas import tpu as pltpu

BOUND_INIT = 0.005
H1 = 400        # logical fc1 width
H1_PAD = 512    # padded to a multiple of 128 lanes
H2 = 256        # fc2 width

_TB_BUCKETS = (128, 256, 512)   # single-tile buckets for small batches


def _round_up(x, m):
    return (x + m - 1) // m * m


def _batch_tiling(B, block_b):
    """Pick (tile_rows, padded_batch) for the batch grid.

    - B <= 512: pad up to one of a few fixed buckets and run a single grid
      step (few distinct compiles; the wasted rows are tiny in absolute time).
    - B > 512: split into >= 2 tiles (so v7x's two TensorCores both get work)
      of at most `block_b` rows each; the tile size is quantised to 64 rows so
      padding waste stays <64 rows/tile and batch sizes don't each recompile.
    """
    b8 = _round_up(B, 8)
    if b8 <= _TB_BUCKETS[-1]:
        for tb in _TB_BUCKETS:
            if b8 <= tb:
                return tb, tb
    n_tiles = max(2, pl.cdiv(b8, block_b))
    tb = min(block_b, _round_up(pl.cdiv(b8, n_tiles), 64))
    return tb, _round_up(b8, tb)


def critic_kernel(x_ref, w1_ref, b1_ref, w2_ref, b2_ref, w3_ref, b3_ref, o_ref):
    """Fused 3-layer MLP on one batch tile.

    x = concat(state, action) arrives pre-concatenated in bf16 (single fc1
    matmul).  Matmul operands are bf16, accumulation / bias / ReLU are f32.
    fc3 (N=1) uses the VPU multiply + XLU lane reduction instead of the MXU.
    """
    h1 = (jnp.dot(x_ref[...], w1_ref[...], preferred_element_type=jnp.float32)
          + b1_ref[...])
    h1 = jnp.maximum(h1, 0.0)

    h2 = (jnp.dot(h1.astype(jnp.bfloat16), w2_ref[...],
                  preferred_element_type=jnp.float32)
          + b2_ref[...])
    h2 = jnp.maximum(h2, 0.0)

    # fc3: (tb,256)@(256,1) would use 1/256 of the MXU's N dimension; do it on
    # the VPU (multiply) + XLU (lane reduce) instead.
    o_ref[...] = jnp.sum(h2 * w3_ref[...], axis=-1, keepdims=True) + b3_ref[0, 0]


def prepare_params(params):
    """One-time prep of logical params into kernel layout.

    - zero-pad hidden width 400 -> 512 (zero W1 cols / b1 entries / W2 rows:
      ReLU(0)=0 and zero rows contribute nothing, so semantics are unchanged),
    - cast matmul weights to bf16 (f32 accumulation kept in the kernel),
    - reshape fc3 weight to a (1, 256) row and its bias to a (1,1) SMEM scalar.
    """
    w1, b1, w2, b2, w3, b3 = params
    pad = H1_PAD - H1
    w1p = jnp.pad(w1, ((0, 0), (0, pad))).astype(jnp.bfloat16)
    b1p = jnp.pad(b1, ((0, 0), (0, pad))).astype(jnp.float32)
    w2p = jnp.pad(w2, ((0, pad), (0, 0))).astype(jnp.bfloat16)
    b2p = b2.astype(jnp.float32)
    w3r = w3.reshape(1, H2).astype(jnp.float32)
    b3s = b3.reshape(1, 1).astype(jnp.float32)
    return (w1p, b1p, w2p, b2p, w3r, b3s)


@functools.partial(jax.jit, static_argnames=("block_b",))
def critic_forward(state, action, kparams, *, block_b=2048):
    """Mirrors Critic.forward using the fused, batch-tiled Pallas kernel."""
    assert block_b % 64 == 0, "block_b must be a multiple of 64"
    w1, b1, w2, b2, w3, b3 = kparams
    state = state.reshape(state.shape[0], -1)
    action = action.reshape(action.shape[0], -1)

    # Fused concat + bf16 cast in the wrapper: one wide input DMA, one fc1 dot.
    x = jnp.concatenate([state, action], axis=1).astype(jnp.bfloat16)
    B, in_dim = x.shape

    tb, b_pad = _batch_tiling(B, block_b)
    if b_pad != B:
        x = jnp.pad(x, ((0, b_pad - B), (0, 0)))   # padded rows sliced off below

    grid = (b_pad // tb,)
    const = lambda i: (0, 0)          # weights/biases stay resident across steps

    flops = 2 * b_pad * (in_dim * H1_PAD + H1_PAD * H2 + H2)
    bytes_accessed = (b_pad * in_dim * 2                      # x (bf16)
                      + in_dim * H1_PAD * 2 + H1_PAD * 4      # W1, b1
                      + H1_PAD * H2 * 2 + H2 * 4              # W2, b2
                      + H2 * 4 + 4                            # W3, b3
                      + b_pad * 4)                            # output

    out = pl.pallas_call(
        critic_kernel,
        out_shape=jax.ShapeDtypeStruct((b_pad, 1), jnp.float32),
        grid=grid,
        in_specs=[
            pl.BlockSpec((tb, in_dim), lambda i: (i, 0)),        # concat(state, action)
            pl.BlockSpec((in_dim, H1_PAD), const),               # W1 (bf16)
            pl.BlockSpec((1, H1_PAD), const),                    # b1
            pl.BlockSpec((H1_PAD, H2), const),                   # W2 (bf16)
            pl.BlockSpec((1, H2), const),                        # b2
            pl.BlockSpec((1, H2), const),                        # W3 as a row
            pl.BlockSpec(memory_space=pltpu.MemorySpace.SMEM),   # b3 scalar
        ],
        out_specs=pl.BlockSpec((tb, 1), lambda i: (i, 0)),
        compiler_params=pltpu.CompilerParams(
            dimension_semantics=("parallel",),
            vmem_limit_bytes=48 * 1024 * 1024,
        ),
        cost_estimate=pl.CostEstimate(flops=flops, transcendentals=0,
                                      bytes_accessed=bytes_accessed),
    )(x, w1, b1, w2, b2, w3, b3)

    return out[:B]


def init_critic_params(key, state_dim, action_dim):
    """Deterministic init matching the PyTorch module's scheme (distributions
    match; RNG streams obviously differ).  Weights stored transposed: (in, out).

    fc1/fc2 weights ~ Normal(0, 1/sqrt(out_features))   (fc_init with size[0]=out)
    fc3 weight ~ Uniform(-BOUND_INIT, BOUND_INIT)
    biases use PyTorch Linear default: Uniform(-1/sqrt(fan_in), 1/sqrt(fan_in))
    """
    in1 = state_dim + action_dim
    k = jax.random.split(key, 6)
    w1 = jax.random.normal(k[0], (in1, H1), jnp.float32) * (1.0 / jnp.sqrt(float(H1)))
    b1 = jax.random.uniform(k[1], (1, H1), jnp.float32,
                            -1.0 / jnp.sqrt(in1), 1.0 / jnp.sqrt(in1))
    w2 = jax.random.normal(k[2], (H1, H2), jnp.float32) * (1.0 / jnp.sqrt(float(H2)))
    b2 = jax.random.uniform(k[3], (1, H2), jnp.float32,
                            -1.0 / jnp.sqrt(float(H1)), 1.0 / jnp.sqrt(float(H1)))
    w3 = jax.random.uniform(k[4], (H2, 1), jnp.float32, -BOUND_INIT, BOUND_INIT)
    b3 = jax.random.uniform(k[5], (1, 1), jnp.float32,
                            -1.0 / jnp.sqrt(float(H2)), 1.0 / jnp.sqrt(float(H2)))
    return (w1, b1, w2, b2, w3, b3)


def critic_reference(state, action, params):
    """Pure-JAX f32 reference of the original module's forward."""
    w1, b1, w2, b2, w3, b3 = params
    x = jnp.concatenate([state.reshape(state.shape[0], -1),
                         action.reshape(action.shape[0], -1)], axis=1)
    h1 = jnp.maximum(x @ w1 + b1, 0.0)
    h2 = jnp.maximum(h1 @ w2 + b2, 0.0)
    return h2 @ w3 + b3


if __name__ == "__main__":
    state_dim, action_dim = 16, 4

    key = jax.random.PRNGKey(0)
    kp, ks, ka = jax.random.split(key, 3)
    params = init_critic_params(kp, state_dim, action_dim)
    kparams = prepare_params(params)

    # Small batch: single-tile path.
    batch = 8
    state = jax.random.normal(ks, (batch, state_dim), jnp.float32)
    action = jax.random.normal(ka, (batch, action_dim), jnp.float32)
    q = jax.block_until_ready(critic_forward(state, action, kparams))
    q_ref = critic_reference(state, action, params)
    assert q.shape == (batch, 1)
    # bf16 matmul operands (f32 accumulation) vs f32 reference -> loosened tolerance.
    assert jnp.allclose(q, q_ref, atol=2e-2, rtol=2e-2), \
        float(jnp.max(jnp.abs(q - q_ref)))

    # Larger batch: exercises the multi-tile (>=2 grid steps) + padding path.
    batch2 = 600
    state2 = jax.random.normal(jax.random.fold_in(ks, 1), (batch2, state_dim), jnp.float32)
    action2 = jax.random.normal(jax.random.fold_in(ka, 1), (batch2, action_dim), jnp.float32)
    q2 = jax.block_until_ready(critic_forward(state2, action2, kparams))
    q2_ref = critic_reference(state2, action2, params)
    assert q2.shape == (batch2, 1)
    assert jnp.allclose(q2, q2_ref, atol=2e-2, rtol=2e-2), \
        float(jnp.max(jnp.abs(q2 - q2_ref)))

    print("KERNEL_OK")
</pallas_src>

<mosaic_0001>
module attributes {stable_mosaic.version = 11 : i64} {
  func.func @critic_kernel(%arg0: i32, %arg1: memref<128x20xbf16, #tpu.memory_space<vmem>>, %arg2: memref<20x512xbf16, #tpu.memory_space<vmem>>, %arg3: memref<1x512xf32, #tpu.memory_space<vmem>>, %arg4: memref<512x256xbf16, #tpu.memory_space<vmem>>, %arg5: memref<1x256xf32, #tpu.memory_space<vmem>>, %arg6: memref<1x256xf32, #tpu.memory_space<vmem>>, %arg7: memref<1x1xf32, #tpu.memory_space<smem>>, %arg8: memref<128x1xf32, #tpu.memory_space<vmem>>) attributes {dimension_semantics = [#tpu.dimension_semantics<parallel>], iteration_bounds = array<i64: 1>, scalar_prefetch = 0 : i64, scratch_operands = 0 : i64, tpu.core_type = #tpu.core_type<tc>, window_params = [{transform_indices = @transform_0, window_bounds = array<i64: 128, 20>}, {pipeline_mode = #tpu.pipeline_mode<synchronous>, transform_indices = @transform_1, window_bounds = array<i64: 20, 512>}, {pipeline_mode = #tpu.pipeline_mode<synchronous>, transform_indices = @transform_2, window_bounds = array<i64: 1, 512>}, {pipeline_mode = #tpu.pipeline_mode<synchronous>, transform_indices = @transform_3, window_bounds = array<i64: 512, 256>}, {pipeline_mode = #tpu.pipeline_mode<synchronous>, transform_indices = @transform_4, window_bounds = array<i64: 1, 256>}, {pipeline_mode = #tpu.pipeline_mode<synchronous>, transform_indices = @transform_5, window_bounds = array<i64: 1, 256>}, {transform_indices = @transform_6, window_bounds = array<i64: 1, 1>}, {transform_indices = @transform_7, window_bounds = array<i64: 128, 1>}]} {
    %c0 = arith.constant 0 : index
    %c0_0 = arith.constant 0 : index
    %0 = vector.load %arg1[%c0, %c0_0] : memref<128x20xbf16, #tpu.memory_space<vmem>>, vector<128x20xbf16>
    %c0_1 = arith.constant 0 : index
    %c0_2 = arith.constant 0 : index
    %1 = vector.load %arg2[%c0_1, %c0_2] : memref<20x512xbf16, #tpu.memory_space<vmem>>, vector<20x512xbf16>
    %cst = arith.constant dense<0.000000e+00> : vector<128x512xf32>
    %2 = tpu.matmul %0, %1, %cst {dimension_numbers = #tpu.dot_dimension_numbers<[1], [0], [0], [1], [0, 0, 1, 1], [], []>} : vector<128x20xbf16>, vector<20x512xbf16>, vector<128x512xf32> -> vector<128x512xf32>
    %c0_3 = arith.constant 0 : index
    %c0_4 = arith.constant 0 : index
    %3 = vector.load %arg3[%c0_3, %c0_4] : memref<1x512xf32, #tpu.memory_space<vmem>>, vector<1x512xf32>
    %4 = vector.broadcast %3 : vector<1x512xf32> to vector<128x512xf32>
    %5 = arith.addf %2, %4 : vector<128x512xf32>
    %cst_5 = arith.constant 0.000000e+00 : f32
    %6 = vector.broadcast %cst_5 : f32 to vector<128x512xf32>
    %7 = arith.maximumf %5, %6 : vector<128x512xf32>
    %8 = arith.truncf %7 : vector<128x512xf32> to vector<128x512xbf16>
    %c0_6 = arith.constant 0 : index
    %c0_7 = arith.constant 0 : index
    %9 = vector.load %arg4[%c0_6, %c0_7] : memref<512x256xbf16, #tpu.memory_space<vmem>>, vector<512x256xbf16>
    %cst_8 = arith.constant dense<0.000000e+00> : vector<128x256xf32>
    %10 = tpu.matmul %8, %9, %cst_8 {dimension_numbers = #tpu.dot_dimension_numbers<[1], [0], [0], [1], [0, 0, 1, 1], [], []>} : vector<128x512xbf16>, vector<512x256xbf16>, vector<128x256xf32> -> vector<128x256xf32>
    %c0_9 = arith.constant 0 : index
    %c0_10 = arith.constant 0 : index
    %11 = vector.load %arg5[%c0_9, %c0_10] : memref<1x256xf32, #tpu.memory_space<vmem>>, vector<1x256xf32>
    %12 = vector.broadcast %11 : vector<1x256xf32> to vector<128x256xf32>
    %13 = arith.addf %10, %12 : vector<128x256xf32>
    %cst_11 = arith.constant 0.000000e+00 : f32
    %14 = vector.broadcast %cst_11 : f32 to vector<128x256xf32>
    %15 = arith.maximumf %13, %14 : vector<128x256xf32>
    %c0_12 = arith.constant 0 : index
    %c0_13 = arith.constant 0 : index
    %16 = vector.load %arg6[%c0_12, %c0_13] : memref<1x256xf32, #tpu.memory_space<vmem>>, vector<1x256xf32>
    %17 = vector.broadcast %16 : vector<1x256xf32> to vector<128x256xf32>
    %18 = arith.mulf %15, %17 : vector<128x256xf32>
    %cst_14 = arith.constant dense<0.000000e+00> : vector<128xf32>
    %19 = vector.multi_reduction <add>, %18, %cst_14 [1] : vector<128x256xf32> to vector<128xf32>
    %20 = vector.shape_cast %19 : vector<128xf32> to vector<128x1xf32>
    %c0_15 = arith.constant 0 : index
    %c0_16 = arith.constant 0 : index
    %21 = memref.load %arg7[%c0_15, %c0_16] : memref<1x1xf32, #tpu.memory_space<smem>>
    %22 = vector.broadcast %21 : f32 to vector<128x1xf32>
    %23 = arith.addf %20, %22 : vector<128x1xf32>
    %c0_17 = arith.constant 0 : index
    %c0_18 = arith.constant 0 : index
    %24 = vector.load %arg8[%c0_17, %c0_18] : memref<128x1xf32, #tpu.memory_space<vmem>>, vector<128x1xf32>
    tpu.vector_store %arg8[%c0_17, %c0_18], %23 {strides = array<i32>} : memref<128x1xf32, #tpu.memory_space<vmem>>, vector<128x1xf32>,
    return
  }
  func.func @transform_0(%arg0: i32) -> (i32, i32) {
    %c0_i32 = arith.constant 0 : i32
    %c0_i32_0 = arith.constant 0 : i32
    return %arg0, %c0_i32 : i32, i32
  }
  func.func @transform_1(%arg0: i32) -> (i32, i32) {
    %c0_i32 = arith.constant 0 : i32
    %c0_i32_0 = arith.constant 0 : i32
    %c0_i32_1 = arith.constant 0 : i32
    return %c0_i32, %c0_i32_0 : i32, i32
  }
  func.func @transform_2(%arg0: i32) -> (i32, i32) {
    %c0_i32 = arith.constant 0 : i32
    %c0_i32_0 = arith.constant 0 : i32
    %c0_i32_1 = arith.constant 0 : i32
    return %c0_i32, %c0_i32_0 : i32, i32
  }
  func.func @transform_3(%arg0: i32) -> (i32, i32) {
    %c0_i32 = arith.constant 0 : i32
    %c0_i32_0 = arith.constant 0 : i32
    %c0_i32_1 = arith.constant 0 : i32
    return %c0_i32, %c0_i32_0 : i32, i32
  }
  func.func @transform_4(%arg0: i32) -> (i32, i32) {
    %c0_i32 = arith.constant 0 : i32
    %c0_i32_0 = arith.constant 0 : i32
    %c0_i32_1 = arith.constant 0 : i32
    return %c0_i32, %c0_i32_0 : i32, i32
  }
  func.func @transform_5(%arg0: i32) -> (i32, i32) {
    %c0_i32 = arith.constant 0 : i32
    %c0_i32_0 = arith.constant 0 : i32
    %c0_i32_1 = arith.constant 0 : i32
    return %c0_i32, %c0_i32_0 : i32, i32
  }
  func.func @transform_6(%arg0: i32) -> (i32, i32) {
    %c0_i32 = arith.constant 0 : i32
    %c0_i32_0 = arith.constant 0 : i32
    %c0_i32_1 = arith.constant 0 : i32
    return %c0_i32, %c0_i32_0 : i32, i32
  }
  func.func @transform_7(%arg0: i32) -> (i32, i32) {
    %c0_i32 = arith.constant 0 : i32
    %c0_i32_0 = arith.constant 0 : i32
    return %arg0, %c0_i32 : i32, i32
  }
}

</mosaic_0001>

<llo_original>
// kernel: critic_forward.1
$region0: #{critic_forward.1}
  #allocation0 [shape = 'u32[]', space=smem, size = 0x4, offset = 0x4, fixed_abs, tag = 'smem constant byte address 0x4 - core index']
  #allocation1 [shape = 'u32[144,128]{1,0:T(1,128)}', space=vmem, size = 0x12000, scoped, tag = 'internal scratch']
  #allocation2 [shape = 'f32[1,1]{1,0:T(1,128)S(6)}', space=smem, size = 0x200, scoped, tag = 'scoped memory for critic_forward.1']
  %s0 = inlined_call_operand.vmem [shape: bf16[128,20], index: 0, kind: input, shape index: {}]
  %s1 = inlined_call_operand.vmem [shape: bf16[20,512], index: 1, kind: input, shape index: {}]
  %s2 = inlined_call_operand.vmem [shape: f32[1,512], index: 2, kind: input, shape index: {}]
  %s3 = inlined_call_operand.hbm [shape: bf16[512,256], index: 3, kind: input, shape index: {}]
  %s4 = inlined_call_operand.vmem [shape: f32[1,256], index: 4, kind: input, shape index: {}]
  %s5 = inlined_call_operand.vmem [shape: f32[1,256], index: 5, kind: input, shape index: {}]
  %s6 = inlined_call_operand.<no memory space> [shape: f32[1,1], index: 6, kind: input, shape index: {}]
  %s7 = inlined_call_operand.vmem [shape: f32[128,1], index: 7, kind: output, shape index: {}]
  %s8 = sld [smem:[#allocation0]]
  $region42: #{critic_forward.1} parent=0
    _
  %s10 = ssub.s32 1, %s8
  %s11 = scalar_select 0, %s10, %s8
  %12 = sst [smem:[#allocation2]] %s6
  $region1: #{critic_forward.1} parent=0
    #allocation3 [shape = 'u8[262144]{0}', space=vmem, size = 0x40000, scoped, tag = 'input window, operand 3, single buffered']
    #allocation4 [shape = 's32[1]{0}', space=sflag, size = 0x4, scoped, tag = 'scoped memory for critic_forward.1']
    %13 = vsyncpa [#allocation4], 0
    // Predicated region
    $region2: #{critic_forward.1} parent=1 // pred_check
      _
    $region3: #{critic_forward.1} parent=1 // pred_check_branch
      %15 = sbr.rel (0) target = $region5
    $region4: #{critic_forward.1} parent=1 // pred_region
      _
    $region5: #{critic_forward.1} parent=1 // pred_fallthru
      _
    // Predicated region
    $region6: #{critic_forward.1} parent=1 // pred_check
      _
    $region7: #{critic_forward.1} parent=1 // pred_check_branch
      %17 = sbr.rel (0) target = $region9
    $region8: #{critic_forward.1} parent=1 // pred_region
      _
    $region9: #{critic_forward.1} parent=1 // pred_fallthru
      _
    // Predicated region
    $region10: #{critic_forward.1} parent=1 // pred_check
      _
    $region11: #{critic_forward.1} parent=1 // pred_check_branch
      %19 = sbr.rel (0) target = $region13
    $region12: #{critic_forward.1} parent=1 // pred_region
      _
    $region13: #{critic_forward.1} parent=1 // pred_fallthru
      _
    // Predicated region
    $region14: #{critic_forward.1} parent=1 // pred_check
      _
    $region15: #{critic_forward.1} parent=1 // pred_check_branch
      %21 = sbr.rel (0) target = $region17
    $region16: #{critic_forward.1} parent=1 // pred_region
      %s23 = ssub.s32 8192, 8192
      %24 = vsyncadd [#allocation4], %s23
      %s25 = sshll.u32 [#allocation3], 4
      %s26 = int_to_ptr.vmem [resolvable:$true] %s25
      %31 = dma.hbm_to_vmem [thread:$0]  %s3, 8192, %s26, [#allocation4], 128, 128, 8
    $region17: #{critic_forward.1} parent=1 // pred_fallthru
      _
    // Predicated region
    $region18: #{critic_forward.1} parent=1 // pred_check
      _
    $region19: #{critic_forward.1} parent=1 // pred_check_branch
      %33 = sbr.rel (0) target = $region21
    $region20: #{critic_forward.1} parent=1 // pred_region
      _
    $region21: #{critic_forward.1} parent=1 // pred_fallthru
      _
    // Predicated region
    $region22: #{critic_forward.1} parent=1 // pred_check
      _
    $region23: #{critic_forward.1} parent=1 // pred_check_branch
      %35 = sbr.rel (0) target = $region25
    $region24: #{critic_forward.1} parent=1 // pred_region
      _
    $region25: #{critic_forward.1} parent=1 // pred_fallthru
      _
    // Predicated region
    $region26: #{critic_forward.1} parent=1 // pred_check
      _
    $region27: #{critic_forward.1} parent=1 // pred_check_branch
      %37 = sbr.rel (0) target = $region29
    $region28: #{critic_forward.1} parent=1 // pred_region
      _
    $region29: #{critic_forward.1} parent=1 // pred_fallthru
      _
    // Predicated region
    $region30: #{critic_forward.1} parent=1 // pred_check
      _
    $region31: #{critic_forward.1} parent=1 // pred_check_branch
      %39 = sbr.rel (0) target = $region33
    $region32: #{critic_forward.1} parent=1 // pred_region
      %40 = dma.done [#allocation4], 8192
    $region33: #{critic_forward.1} parent=1 // pred_fallthru
      _
    %v42 = vld [vmem:[%s0] sm:$0xf]
    %v43 = vld [vmem:[%s0 + $0x4] sm:$0xf]
    %v44 = vld [vmem:[%s0 + $0x8] sm:$0xf]
    %v45 = vld [vmem:[%s0 + $0xc] sm:$0xf]
    %v46 = vld [vmem:[%s0 + $0x10] sm:$0xf]
    %v47 = vld [vmem:[%s0 + $0x14] sm:$0xf]
    %v48 = vld [vmem:[%s0 + $0x18] sm:$0xf]
    %v49 = vld [vmem:[%s0 + $0x1c] sm:$0xf]
    %v50 = vld [vmem:[%s0 + $0x20] sm:$0xf]
    %v51 = vld [vmem:[%s0 + $0x24] sm:$0xf]
    %v52 = vld [vmem:[%s0 + $0x28] sm:$0xf]
    %v53 = vld [vmem:[%s0 + $0x2c] sm:$0xf]
    %v54 = vld [vmem:[%s0 + $0x30] sm:$0xf]
    %v55 = vld [vmem:[%s0 + $0x34] sm:$0xf]
    %v56 = vld [vmem:[%s0 + $0x38] sm:$0xf]
    %v57 = vld [vmem:[%s0 + $0x3c] sm:$0xf]
    %v58 = vld [vmem:[%s1] sm:$0xff]
    %v59 = vld [vmem:[%s1 + $0x8] sm:$0xff]
    %v60 = vld [vmem:[%s1 + $0x10] sm:$0xff]
    %v61 = vld [vmem:[%s1 + $0x18] sm:$0xff]
    %v62 = vld [vmem:[%s1 + $0x20] sm:$0x33]
    %v63 = vld [vmem:[%s1 + $0x28] sm:$0x33]
    %v64 = vld [vmem:[%s2] sm:$0xf]
    %v66 = vlaneseq
    %v67 = vshrl.u32 %v66, 7
    %v68 = vsub.s32 0, %v67
    %v69 = vrot.slane %v64, %v68
    %v70 = vlaneseq
    %v71 = vshrl.u32 %v70, 7
    %v72 = vsub.s32 1, %v71
    %v73 = vrot.slane %v64, %v72
    %v74 = vlaneseq
    %v75 = vshrl.u32 %v74, 7
    %v76 = vsub.s32 2, %v75
    %v77 = vrot.slane %v64, %v76
    %v78 = vlaneseq
    %v79 = vshrl.u32 %v78, 7
    %v80 = vsub.s32 3, %v79
    %v81 = vrot.slane %v64, %v80
    %v102 = vunpack.c.l.b16 %v42
    %v103 = vunpack.c.l.b16 %v43
    %v104 = vunpack.c.l.b16 %v44
    %v105 = vunpack.c.l.b16 %v45
    %v106 = vunpack.c.l.b16 %v46
    %v107 = vunpack.c.l.b16 %v47
    %v108 = vunpack.c.l.b16 %v48
    %v109 = vunpack.c.l.b16 %v49
    %v110 = vunpack.c.l.b16 %v50
    %v111 = vunpack.c.l.b16 %v51
    %v112 = vunpack.c.l.b16 %v52
    %v113 = vunpack.c.l.b16 %v53
    %v114 = vunpack.c.l.b16 %v54
    %v115 = vunpack.c.l.b16 %v55
    %v116 = vunpack.c.l.b16 %v56
    %v117 = vunpack.c.l.b16 %v57
    %v118 = vpack.c.b16 %v103, %v102
    %v119 = vpack.c.b16 %v105, %v104
    %v120 = vpack.c.b16 %v107, %v106
    %v121 = vpack.c.b16 %v109, %v108
    %v122 = vpack.c.b16 %v111, %v110
    %v123 = vpack.c.b16 %v113, %v112
    %v124 = vpack.c.b16 %v115, %v114
    %v125 = vpack.c.b16 %v117, %v116
    %v132 = vunpack.c.l.b16 %v58
    %v133 = vunpack.c.h.b16 %v58
    %v134 = vunpack.c.l.b16 %v59
    %v135 = vunpack.c.h.b16 %v59
    %v136 = vunpack.c.l.b16 %v60
    %v137 = vunpack.c.h.b16 %v60
    %v138 = vunpack.c.l.b16 %v61
    %v139 = vunpack.c.h.b16 %v61
    %v140 = vunpack.c.l.b16 %v62
    %v141 = vunpack.c.h.b16 %v62
    %v142 = vunpack.c.l.b16 %v63
    %v143 = vunpack.c.h.b16 %v63
    %v144 = vpack.c.b16 %v136, %v132
    %v145 = vpack.c.b16 %v137, %v133
    %v146 = vpack.c.b16 %v138, %v134
    %v147 = vpack.c.b16 %v139, %v135
    %v148 = vpack.c.b16 %v140, %v140
    %v149 = vpack.c.b16 %v141, %v141
    %v150 = vpack.c.b16 %v142, %v142
    %v151 = vpack.c.b16 %v143, %v143
    %vm156 = vcmask 162816
    %v158 = vsel %vm156, %v118, 0
    %v161 = vsel %vm156, %v119, 0
    %v164 = vsel %vm156, %v120, 0
    %v167 = vsel %vm156, %v121, 0
    %v170 = vsel %vm156, %v122, 0
    %v173 = vsel %vm156, %v123, 0
    %v176 = vsel %vm156, %v124, 0
    %v179 = vsel %vm156, %v125, 0
    %vm181 = vcmask 1041408
    %v183 = vsel %vm181, %v148, 0
    %v186 = vsel %vm181, %v149, 0
    %v189 = vsel %vm181, %v150, 0
    %v192 = vsel %vm181, %v151, 0
    %194 = vmatprep.subr.bf16.mxu0 0
    %195 = vmatpush1.bf16.msra.mxu0 0
    %196 = vmatprep.subr.bf16.mxu0 0
    %197 = vmatpush1.bf16.msra.mxu0 0
    %198 = vmatprep.subr.bf16.mxu0 0
    %199 = vmatpush1.bf16.msra.mxu0 0
    %200 = vmatprep.subr.bf16.mxu0 0
    %201 = vmatpush1.bf16.msra.mxu0 0
    %202 = vmatprep.subr.bf16.mxu0 0
    %203 = vmatpush1.bf16.msra.mxu0 0
    %204 = vmatprep.subr.bf16.mxu0 0
    %205 = vmatpush1.bf16.msra.mxu0 0
    %206 = vmatprep.subr.bf16.mxu0 %v186
    %207 = vmatpush1.bf16.msra.mxu0 %v183
    %208 = vmatprep.subr.bf16.mxu0 %v145
    %209 = vmatpush1.bf16.msra.mxu0 %v144
    %210 = vmatprep.subr.bf16.mxu0 0
    %211 = vmatpush2.bf16.msra.mxu0 0
    %212 = vmatprep.subr.bf16.mxu0 0
    %213 = vmatpush2.bf16.msra.mxu0 0
    %214 = vmatprep.subr.bf16.mxu0 0
    %215 = vmatpush2.bf16.msra.mxu0 0
    %216 = vmatprep.subr.bf16.mxu0 0
    %217 = vmatpush2.bf16.msra.mxu0 0
    %218 = vmatprep.subr.bf16.mxu0 0
    %219 = vmatpush2.bf16.msra.mxu0 0
    %220 = vmatprep.subr.bf16.mxu0 0
    %221 = vmatpush2.bf16.msra.mxu0 0
    %222 = vmatprep.subr.bf16.mxu0 0
    %223 = vmatpush2.bf16.msra.mxu0 0
    %224 = vmatprep.subr.bf16.mxu0 0
    %225 = vmatpush2.bf16.msra.mxu0 0
    %226 = vmatprep.mubr.bf16.mxu0 0
    %227 = vmatmul.mubr.bf16.gmra.mxu0 %v158
    %v228 = vpop.f32.mrf.mxu0
    %v229 = vadd.f32 %v69, %v228
    %v230 = vpop.f32.mrf.mxu0
    %v231 = vadd.f32 %v73, %v230
    %v232 = vpop.f32.mrf.mxu0
    %v233 = vadd.f32 %v69, %v232
    %v234 = vpop.f32.mrf.mxu0
    %v235 = vadd.f32 %v73, %v234
    %236 = vmatprep.mubr.bf16.mxu0 0
    %237 = vmatmul.mubr.bf16.gmra.mxu0 %v161
    %v238 = vpop.f32.mrf.mxu0
    %v239 = vadd.f32 %v69, %v238
    %v240 = vpop.f32.mrf.mxu0
    %v241 = vadd.f32 %v73, %v240
    %v242 = vpop.f32.mrf.mxu0
    %v243 = vadd.f32 %v69, %v242
    %v244 = vpop.f32.mrf.mxu0
    %v245 = vadd.f32 %v73, %v244
    %246 = vmatprep.mubr.bf16.mxu0 0
    %247 = vmatmul.mubr.bf16.gmra.mxu0 %v164
    %v248 = vpop.f32.mrf.mxu0
    %v249 = vadd.f32 %v69, %v248
    %v250 = vpop.f32.mrf.mxu0
    %v251 = vadd.f32 %v73, %v250
    %v252 = vpop.f32.mrf.mxu0
    %v253 = vadd.f32 %v69, %v252
    %v254 = vpop.f32.mrf.mxu0
    %v255 = vadd.f32 %v73, %v254
    %256 = vmatprep.mubr.bf16.mxu0 0
    %257 = vmatmul.mubr.bf16.gmra.mxu0 %v167
    %v258 = vpop.f32.mrf.mxu0
    %v259 = vadd.f32 %v69, %v258
    %v260 = vpop.f32.mrf.mxu0
    %v261 = vadd.f32 %v73, %v260
    %v262 = vpop.f32.mrf.mxu0
    %v263 = vadd.f32 %v69, %v262
    %v264 = vpop.f32.mrf.mxu0
    %v265 = vadd.f32 %v73, %v264
    %266 = vmatprep.mubr.bf16.mxu0 0
    %267 = vmatmul.mubr.bf16.gmra.mxu0 %v170
    %v268 = vpop.f32.mrf.mxu0
    %v269 = vadd.f32 %v69, %v268
    %v270 = vpop.f32.mrf.mxu0
    %v271 = vadd.f32 %v73, %v270
    %v272 = vpop.f32.mrf.mxu0
    %v273 = vadd.f32 %v69, %v272
    %v274 = vpop.f32.mrf.mxu0
    %v275 = vadd.f32 %v73, %v274
    %276 = vmatprep.mubr.bf16.mxu0 0
    %277 = vmatmul.mubr.bf16.gmra.mxu0 %v173
    %v278 = vpop.f32.mrf.mxu0
    %v279 = vadd.f32 %v69, %v278
    %v280 = vpop.f32.mrf.mxu0
    %v281 = vadd.f32 %v73, %v280
    %v282 = vpop.f32.mrf.mxu0
    %v283 = vadd.f32 %v69, %v282
    %v284 = vpop.f32.mrf.mxu0
    %v285 = vadd.f32 %v73, %v284
    %286 = vmatprep.mubr.bf16.mxu0 0
    %287 = vmatmul.mubr.bf16.gmra.mxu0 %v176
    %v288 = vpop.f32.mrf.mxu0
    %v289 = vadd.f32 %v69, %v288
    %v290 = vpop.f32.mrf.mxu0
    %v291 = vadd.f32 %v73, %v290
    %v292 = vpop.f32.mrf.mxu0
    %v293 = vadd.f32 %v69, %v292
    %v294 = vpop.f32.mrf.mxu0
    %v295 = vadd.f32 %v73, %v294
    %296 = vmatprep.mubr.bf16.mxu0 0
    %297 = vmatmul.mubr.bf16.gmra.mxu0 %v179
    %v298 = vpop.f32.mrf.mxu0
    %v299 = vadd.f32 %v69, %v298
    %v300 = vpop.f32.mrf.mxu0
    %v301 = vadd.f32 %v73, %v300
    %v302 = vpop.f32.mrf.mxu0
    %v303 = vadd.f32 %v69, %v302
    %v304 = vpop.f32.mrf.mxu0
    %v305 = vadd.f32 %v73, %v304
    %306 = vdwg.mxu0
    %307 = vmatprep.subr.bf16.mxu0 0
    %308 = vmatpush1.bf16.msra.mxu0 0
    %309 = vmatprep.subr.bf16.mxu0 0
    %310 = vmatpush1.bf16.msra.mxu0 0
    %311 = vmatprep.subr.bf16.mxu0 0
    %312 = vmatpush1.bf16.msra.mxu0 0
    %313 = vmatprep.subr.bf16.mxu0 0
    %314 = vmatpush1.bf16.msra.mxu0 0
    %315 = vmatprep.subr.bf16.mxu0 0
    %316 = vmatpush1.bf16.msra.mxu0 0
    %317 = vmatprep.subr.bf16.mxu0 0
    %318 = vmatpush1.bf16.msra.mxu0 0
    %319 = vmatprep.subr.bf16.mxu0 %v192
    %320 = vmatpush1.bf16.msra.mxu0 %v189
    %321 = vmatprep.subr.bf16.mxu0 %v147
    %322 = vmatpush1.bf16.msra.mxu0 %v146
    %323 = vmatprep.subr.bf16.mxu0 0
    %324 = vmatpush2.bf16.msra.mxu0 0
    %325 = vmatprep.subr.bf16.mxu0 0
    %326 = vmatpush2.bf16.msra.mxu0 0
    %327 = vmatprep.subr.bf16.mxu0 0
    %328 = vmatpush2.bf16.msra.mxu0 0
    %329 = vmatprep.subr.bf16.mxu0 0
    %330 = vmatpush2.bf16.msra.mxu0 0
    %331 = vmatprep.subr.bf16.mxu0 0
    %332 = vmatpush2.bf16.msra.mxu0 0
    %333 = vmatprep.subr.bf16.mxu0 0
    %334 = vmatpush2.bf16.msra.mxu0 0
    %335 = vmatprep.subr.bf16.mxu0 0
    %336 = vmatpush2.bf16.msra.mxu0 0
    %337 = vmatprep.subr.bf16.mxu0 0
    %338 = vmatpush2.bf16.msra.mxu0 0
    %339 = vmatprep.mubr.bf16.mxu0 0
    %340 = vmatmul.mubr.bf16.gmra.mxu0 %v158
    %v341 = vpop.f32.mrf.mxu0
    %v342 = vadd.f32 %v77, %v341
    %v343 = vpop.f32.mrf.mxu0
    %v344 = vadd.f32 %v81, %v343
    %v345 = vpop.f32.mrf.mxu0
    %v346 = vadd.f32 %v77, %v345
    %v347 = vpop.f32.mrf.mxu0
    %v348 = vadd.f32 %v81, %v347
    %349 = vmatprep.mubr.bf16.mxu0 0
    %350 = vmatmul.mubr.bf16.gmra.mxu0 %v161
    %v351 = vpop.f32.mrf.mxu0
    %v352 = vadd.f32 %v77, %v351
    %v353 = vpop.f32.mrf.mxu0
    %v354 = vadd.f32 %v81, %v353
    %v355 = vpop.f32.mrf.mxu0
    %v356 = vadd.f32 %v77, %v355
    %v357 = vpop.f32.mrf.mxu0
    %v358 = vadd.f32 %v81, %v357
    %359 = vmatprep.mubr.bf16.mxu0 0
    %360 = vmatmul.mubr.bf16.gmra.mxu0 %v164
    %v361 = vpop.f32.mrf.mxu0
    %v362 = vadd.f32 %v77, %v361
    %v363 = vpop.f32.mrf.mxu0
    %v364 = vadd.f32 %v81, %v363
    %v365 = vpop.f32.mrf.mxu0
    %v366 = vadd.f32 %v77, %v365
    %v367 = vpop.f32.mrf.mxu0
    %v368 = vadd.f32 %v81, %v367
    %369 = vmatprep.mubr.bf16.mxu0 0
    %370 = vmatmul.mubr.bf16.gmra.mxu0 %v167
    %v371 = vpop.f32.mrf.mxu0
    %v372 = vadd.f32 %v77, %v371
    %v373 = vpop.f32.mrf.mxu0
    %v374 = vadd.f32 %v81, %v373
    %v375 = vpop.f32.mrf.mxu0
    %v376 = vadd.f32 %v77, %v375
    %v377 = vpop.f32.mrf.mxu0
    %v378 = vadd.f32 %v81, %v377
    %379 = vmatprep.mubr.bf16.mxu0 0
    %380 = vmatmul.mubr.bf16.gmra.mxu0 %v170
    %v381 = vpop.f32.mrf.mxu0
    %v382 = vadd.f32 %v77, %v381
    %v383 = vpop.f32.mrf.mxu0
    %v384 = vadd.f32 %v81, %v383
    %v385 = vpop.f32.mrf.mxu0
    %v386 = vadd.f32 %v77, %v385
    %v387 = vpop.f32.mrf.mxu0
    %v388 = vadd.f32 %v81, %v387
    %389 = vmatprep.mubr.bf16.mxu0 0
    %390 = vmatmul.mubr.bf16.gmra.mxu0 %v173
    %v391 = vpop.f32.mrf.mxu0
    %v392 = vadd.f32 %v77, %v391
    %v393 = vpop.f32.mrf.mxu0
    %v394 = vadd.f32 %v81, %v393
    %v395 = vpop.f32.mrf.mxu0
    %v396 = vadd.f32 %v77, %v395
    %v397 = vpop.f32.mrf.mxu0
    %v398 = vadd.f32 %v81, %v397
    %399 = vmatprep.mubr.bf16.mxu0 0
    %400 = vmatmul.mubr.bf16.gmra.mxu0 %v176
    %v401 = vpop.f32.mrf.mxu0
    %v402 = vadd.f32 %v77, %v401
    %v403 = vpop.f32.mrf.mxu0
    %v404 = vadd.f32 %v81, %v403
    %v405 = vpop.f32.mrf.mxu0
    %v406 = vadd.f32 %v77, %v405
    %v407 = vpop.f32.mrf.mxu0
    %v408 = vadd.f32 %v81, %v407
    %409 = vmatprep.mubr.bf16.mxu0 0
    %410 = vmatmul.mubr.bf16.gmra.mxu0 %v179
    %v411 = vpop.f32.mrf.mxu0
    %v412 = vadd.f32 %v77, %v411
    %v413 = vpop.f32.mrf.mxu0
    %v414 = vadd.f32 %v81, %v413
    %v415 = vpop.f32.mrf.mxu0
    %v416 = vadd.f32 %v77, %v415
    %v417 = vpop.f32.mrf.mxu0
    %v418 = vadd.f32 %v81, %v417
    %419 = vdwg.mxu0
    %v420 = vmax.f32 %v229, 0.0
    %v421 = vmax.f32 %v231, 0.0
    %v422 = vmax.f32 %v342, 0.0
    %v423 = vmax.f32 %v344, 0.0
    %v424 = vmax.f32 %v233, 0.0
    %v425 = vmax.f32 %v235, 0.0
    %v426 = vmax.f32 %v346, 0.0
    %v427 = vmax.f32 %v348, 0.0
    %v428 = vmax.f32 %v239, 0.0
    %v429 = vmax.f32 %v241, 0.0
    %v430 = vmax.f32 %v352, 0.0
    %v431 = vmax.f32 %v354, 0.0
    %v432 = vmax.f32 %v243, 0.0
    %v433 = vmax.f32 %v245, 0.0
    %v434 = vmax.f32 %v356, 0.0
    %v435 = vmax.f32 %v358, 0.0
    %v436 = vmax.f32 %v249, 0.0
    %v437 = vmax.f32 %v251, 0.0
    %v438 = vmax.f32 %v362, 0.0
    %v439 = vmax.f32 %v364, 0.0
    %v440 = vmax.f32 %v253, 0.0
    %v441 = vmax.f32 %v255, 0.0
    %v442 = vmax.f32 %v366, 0.0
    %v443 = vmax.f32 %v368, 0.0
    %v444 = vmax.f32 %v259, 0.0
    %v445 = vmax.f32 %v261, 0.0
    %v446 = vmax.f32 %v372, 0.0
    %v447 = vmax.f32 %v374, 0.0
    %v448 = vmax.f32 %v263, 0.0
    %v449 = vmax.f32 %v265, 0.0
    %v450 = vmax.f32 %v376, 0.0
    %v451 = vmax.f32 %v378, 0.0
    %v452 = vmax.f32 %v269, 0.0
    %v453 = vmax.f32 %v271, 0.0
    %v454 = vmax.f32 %v382, 0.0
    %v455 = vmax.f32 %v384, 0.0
    %v456 = vmax.f32 %v273, 0.0
    %v457 = vmax.f32 %v275, 0.0
    %v458 = vmax.f32 %v386, 0.0
    %v459 = vmax.f32 %v388, 0.0
    %v460 = vmax.f32 %v279, 0.0
    %v461 = vmax.f32 %v281, 0.0
    %v462 = vmax.f32 %v392, 0.0
    %v463 = vmax.f32 %v394, 0.0
    %v464 = vmax.f32 %v283, 0.0
    %v465 = vmax.f32 %v285, 0.0
    %v466 = vmax.f32 %v396, 0.0
    %v467 = vmax.f32 %v398, 0.0
    %v468 = vmax.f32 %v289, 0.0
    %v469 = vmax.f32 %v291, 0.0
    %v470 = vmax.f32 %v402, 0.0
    %v471 = vmax.f32 %v404, 0.0
    %v472 = vmax.f32 %v293, 0.0
    %v473 = vmax.f32 %v295, 0.0
    %v474 = vmax.f32 %v406, 0.0
    %v475 = vmax.f32 %v408, 0.0
    %v476 = vmax.f32 %v299, 0.0
    %v477 = vmax.f32 %v301, 0.0
    %v478 = vmax.f32 %v412, 0.0
    %v479 = vmax.f32 %v414, 0.0
    %v480 = vmax.f32 %v303, 0.0
    %v481 = vmax.f32 %v305, 0.0
    %v482 = vmax.f32 %v416, 0.0
    %v483 = vmax.f32 %v418, 0.0
    %v484 = vpack.c.bf16 %v424, %v420
    %v485 = vpack.c.bf16 %v425, %v421
    %v486 = vpack.c.bf16 %v426, %v422
    %v487 = vpack.c.bf16 %v427, %v423
    %v488 = vpack.c.bf16 %v432, %v428
    %v489 = vpack.c.bf16 %v433, %v429
    %v490 = vpack.c.bf16 %v434, %v430
    %v491 = vpack.c.bf16 %v435, %v431
    %v492 = vpack.c.bf16 %v440, %v436
    %v493 = vpack.c.bf16 %v441, %v437
    %v494 = vpack.c.bf16 %v442, %v438
    %v495 = vpack.c.bf16 %v443, %v439
    %v496 = vpack.c.bf16 %v448, %v444
    %v497 = vpack.c.bf16 %v449, %v445
    %v498 = vpack.c.bf16 %v450, %v446
    %v499 = vpack.c.bf16 %v451, %v447
    %v500 = vpack.c.bf16 %v456, %v452
    %v501 = vpack.c.bf16 %v457, %v453
    %v502 = vpack.c.bf16 %v458, %v454
    %v503 = vpack.c.bf16 %v459, %v455
    %v504 = vpack.c.bf16 %v464, %v460
    %v505 = vpack.c.bf16 %v465, %v461
    %v506 = vpack.c.bf16 %v466, %v462
    %v507 = vpack.c.bf16 %v467, %v463
    %v508 = vpack.c.bf16 %v472, %v468
    %v509 = vpack.c.bf16 %v473, %v469
    %v510 = vpack.c.bf16 %v474, %v470
    %v511 = vpack.c.bf16 %v475, %v471
    %v512 = vpack.c.bf16 %v480, %v476
    %v513 = vpack.c.bf16 %v481, %v477
    %v514 = vpack.c.bf16 %v482, %v478
    %v515 = vpack.c.bf16 %v483, %v479
    %v516 = vld [vmem:[#allocation3] sm:$0xff]
    %v517 = vld [vmem:[#allocation3 + $0x8] sm:$0xff]
    %v518 = vld [vmem:[#allocation3 + $0x10] sm:$0xff]
    %v519 = vld [vmem:[#allocation3 + $0x18] sm:$0xff]
    %v520 = vld [vmem:[#allocation3 + $0x20] sm:$0xff]
    %v521 = vld [vmem:[#allocation3 + $0x28] sm:$0xff]
    %v522 = vld [vmem:[#allocation3 + $0x30] sm:$0xff]
    %v523 = vld [vmem:[#allocation3 + $0x38] sm:$0xff]
    %v524 = vld [vmem:[#allocation3 + $0x40] sm:$0xff]
    %v525 = vld [vmem:[#allocation3 + $0x48] sm:$0xff]
    %v526 = vld [vmem:[#allocation3 + $0x50] sm:$0xff]
    %v527 = vld [vmem:[#allocation3 + $0x58] sm:$0xff]
    %v528 = vld [vmem:[#allocation3 + $0x60] sm:$0xff]
    %v529 = vld [vmem:[#allocation3 + $0x68] sm:$0xff]
    %v530 = vld [vmem:[#allocation3 + $0x70] sm:$0xff]
    %v531 = vld [vmem:[#allocation3 + $0x78] sm:$0xff]
    %v532 = vld [vmem:[#allocation3 + $0x80] sm:$0xff]
    %v533 = vld [vmem:[#allocation3 + $0x88] sm:$0xff]
    %v534 = vld [vmem:[#allocation3 + $0x90] sm:$0xff]
    %v535 = vld [vmem:[#allocation3 + $0x98] sm:$0xff]
    %v536 = vld [vmem:[#allocation3 + $0xa0] sm:$0xff]
    %v537 = vld [vmem:[#allocation3 + $0xa8] sm:$0xff]
    %v538 = vld [vmem:[#allocation3 + $0xb0] sm:$0xff]
    %v539 = vld [vmem:[#allocation3 + $0xb8] sm:$0xff]
    %v540 = vld [vmem:[#allocation3 + $0xc0] sm:$0xff]
    %v541 = vld [vmem:[#allocation3 + $0xc8] sm:$0xff]
    %v542 = vld [vmem:[#allocation3 + $0xd0] sm:$0xff]
    %v543 = vld [vmem:[#allocation3 + $0xd8] sm:$0xff]
    %v544 = vld [vmem:[#allocation3 + $0xe0] sm:$0xff]
    %v545 = vld [vmem:[#allocation3 + $0xe8] sm:$0xff]
    %v546 = vld [vmem:[#allocation3 + $0xf0] sm:$0xff]
    %v547 = vld [vmem:[#allocation3 + $0xf8] sm:$0xff]
    %v548 = vld [vmem:[#allocation3 + $0x100] sm:$0xff]
    %v549 = vld [vmem:[#allocation3 + $0x108] sm:$0xff]
    %v550 = vld [vmem:[#allocation3 + $0x110] sm:$0xff]
    %v551 = vld [vmem:[#allocation3 + $0x118] sm:$0xff]
    %v552 = vld [vmem:[#allocation3 + $0x120] sm:$0xff]
    %v553 = vld [vmem:[#allocation3 + $0x128] sm:$0xff]
    %v554 = vld [vmem:[#allocation3 + $0x130] sm:$0xff]
    %v555 = vld [vmem:[#allocation3 + $0x138] sm:$0xff]
    %v556 = vld [vmem:[#allocation3 + $0x140] sm:$0xff]
    %v557 = vld [vmem:[#allocation3 + $0x148] sm:$0xff]
    %v558 = vld [vmem:[#allocation3 + $0x150] sm:$0xff]
    %v559 = vld [vmem:[#allocation3 + $0x158] sm:$0xff]
    %v560 = vld [vmem:[#allocation3 + $0x160] sm:$0xff]
    %v561 = vld [vmem:[#allocation3 + $0x168] sm:$0xff]
    %v562 = vld [vmem:[#allocation3 + $0x170] sm:$0xff]
    %v563 = vld [vmem:[#allocation3 + $0x178] sm:$0xff]
    %v564 = vld [vmem:[#allocation3 + $0x180] sm:$0xff]
    %v565 = vld [vmem:[#allocation3 + $0x188] sm:$0xff]
    %v566 = vld [vmem:[#allocation3 + $0x190] sm:$0xff]
    %v567 = vld [vmem:[#allocation3 + $0x198] sm:$0xff]
    %v568 = vld [vmem:[#allocation3 + $0x1a0] sm:$0xff]
    %v569 = vld [vmem:[#allocation3 + $0x1a8] sm:$0xff]
    %v570 = vld [vmem:[#allocation3 + $0x1b0] sm:$0xff]
    %v571 = vld [vmem:[#allocation3 + $0x1b8] sm:$0xff]
    %v572 = vld [vmem:[#allocation3 + $0x1c0] sm:$0xff]
    %v573 = vld [vmem:[#allocation3 + $0x1c8] sm:$0xff]
    %v574 = vld [vmem:[#allocation3 + $0x1d0] sm:$0xff]
    %v575 = vld [vmem:[#allocation3 + $0x1d8] sm:$0xff]
    %v576 = vld [vmem:[#allocation3 + $0x1e0] sm:$0xff]
    %v577 = vld [vmem:[#allocation3 + $0x1e8] sm:$0xff]
    %v578 = vld [vmem:[#allocation3 + $0x1f0] sm:$0xff]
    %v579 = vld [vmem:[#allocation3 + $0x1f8] sm:$0xff]
    %v580 = vld [vmem:[%s4] sm:$0x3]
    %v582 = vlaneseq
    %v583 = vshrl.u32 %v582, 7
    %v584 = vsub.s32 0, %v583
    %v585 = vrot.slane %v580, %v584
    %v586 = vlaneseq
    %v587 = vshrl.u32 %v586, 7
    %v588 = vsub.s32 1, %v587
    %v589 = vrot.slane %v580, %v588
    %v656 = vunpack.c.l.b16 %v516
    %v657 = vunpack.c.h.b16 %v516
    %v658 = vunpack.c.l.b16 %v517
    %v659 = vunpack.c.h.b16 %v517
    %v660 = vunpack.c.l.b16 %v518
    %v661 = vunpack.c.h.b16 %v518
    %v662 = vunpack.c.l.b16 %v519
    %v663 = vunpack.c.h.b16 %v519
    %v664 = vunpack.c.l.b16 %v520
    %v665 = vunpack.c.h.b16 %v520
    %v666 = vunpack.c.l.b16 %v521
    %v667 = vunpack.c.h.b16 %v521
    %v668 = vunpack.c.l.b16 %v522
    %v669 = vunpack.c.h.b16 %v522
    %v670 = vunpack.c.l.b16 %v523
    %v671 = vunpack.c.h.b16 %v523
    %v672 = vunpack.c.l.b16 %v524
    %v673 = vunpack.c.h.b16 %v524
    %v674 = vunpack.c.l.b16 %v525
    %v675 = vunpack.c.h.b16 %v525
    %v676 = vunpack.c.l.b16 %v526
    %v677 = vunpack.c.h.b16 %v526
    %v678 = vunpack.c.l.b16 %v527
    %v679 = vunpack.c.h.b16 %v527
    %v680 = vunpack.c.l.b16 %v528
    %v681 = vunpack.c.h.b16 %v528
    %v682 = vunpack.c.l.b16 %v529
    %v683 = vunpack.c.h.b16 %v529
    %v684 = vunpack.c.l.b16 %v530
    %v685 = vunpack.c.h.b16 %v530
    %v686 = vunpack.c.l.b16 %v531
    %v687 = vunpack.c.h.b16 %v531
    %v688 = vunpack.c.l.b16 %v532
    %v689 = vunpack.c.h.b16 %v532
    %v690 = vunpack.c.l.b16 %v533
    %v691 = vunpack.c.h.b16 %v533
    %v692 = vunpack.c.l.b16 %v534
    %v693 = vunpack.c.h.b16 %v534
    %v694 = vunpack.c.l.b16 %v535
    %v695 = vunpack.c.h.b16 %v535
    %v696 = vunpack.c.l.b16 %v536
    %v697 = vunpack.c.h.b16 %v536
    %v698 = vunpack.c.l.b16 %v537
    %v699 = vunpack.c.h.b16 %v537
    %v700 = vunpack.c.l.b16 %v538
    %v701 = vunpack.c.h.b16 %v538
    %v702 = vunpack.c.l.b16 %v539
    %v703 = vunpack.c.h.b16 %v539
    %v704 = vunpack.c.l.b16 %v540
    %v705 = vunpack.c.h.b16 %v540
    %v706 = vunpack.c.l.b16 %v541
    %v707 = vunpack.c.h.b16 %v541
    %v708 = vunpack.c.l.b16 %v542
    %v709 = vunpack.c.h.b16 %v542
    %v710 = vunpack.c.l.b16 %v543
    %v711 = vunpack.c.h.b16 %v543
    %v712 = vunpack.c.l.b16 %v544
    %v713 = vunpack.c.h.b16 %v544
    %v714 = vunpack.c.l.b16 %v545
    %v715 = vunpack.c.h.b16 %v545
    %v716 = vunpack.c.l.b16 %v546
    %v717 = vunpack.c.h.b16 %v546
    %v718 = vunpack.c.l.b16 %v547
    %v719 = vunpack.c.h.b16 %v547
    %v720 = vunpack.c.l.b16 %v548
    %v721 = vunpack.c.h.b16 %v548
    %v722 = vunpack.c.l.b16 %v549
    %v723 = vunpack.c.h.b16 %v549
    %v724 = vunpack.c.l.b16 %v550
    %v725 = vunpack.c.h.b16 %v550
    %v726 = vunpack.c.l.b16 %v551
    %v727 = vunpack.c.h.b16 %v551
    %v728 = vunpack.c.l.b16 %v552
    %v729 = vunpack.c.h.b16 %v552
    %v730 = vunpack.c.l.b16 %v553
    %v731 = vunpack.c.h.b16 %v553
    %v732 = vunpack.c.l.b16 %v554
    %v733 = vunpack.c.h.b16 %v554
    %v734 = vunpack.c.l.b16 %v555
    %v735 = vunpack.c.h.b16 %v555
    %v736 = vunpack.c.l.b16 %v556
    %v737 = vunpack.c.h.b16 %v556
    %v738 = vunpack.c.l.b16 %v557
    %v739 = vunpack.c.h.b16 %v557
    %v740 = vunpack.c.l.b16 %v558
    %v741 = vunpack.c.h.b16 %v558
    %v742 = vunpack.c.l.b16 %v559
    %v743 = vunpack.c.h.b16 %v559
    %v744 = vunpack.c.l.b16 %v560
    %v745 = vunpack.c.h.b16 %v560
    %v746 = vunpack.c.l.b16 %v561
    %v747 = vunpack.c.h.b16 %v561
    %v748 = vunpack.c.l.b16 %v562
    %v749 = vunpack.c.h.b16 %v562
    %v750 = vunpack.c.l.b16 %v563
    %v751 = vunpack.c.h.b16 %v563
    %v752 = vunpack.c.l.b16 %v564
    %v753 = vunpack.c.h.b16 %v564
    %v754 = vunpack.c.l.b16 %v565
    %v755 = vunpack.c.h.b16 %v565
    %v756 = vunpack.c.l.b16 %v566
    %v757 = vunpack.c.h.b16 %v566
    %v758 = vunpack.c.l.b16 %v567
    %v759 = vunpack.c.h.b16 %v567
    %v760 = vunpack.c.l.b16 %v568
    %v761 = vunpack.c.h.b16 %v568
    %v762 = vunpack.c.l.b16 %v569
    %v763 = vunpack.c.h.b16 %v569
    %v764 = vunpack.c.l.b16 %v570
    %v765 = vunpack.c.h.b16 %v570
    %v766 = vunpack.c.l.b16 %v571
    %v767 = vunpack.c.h.b16 %v571
    %v768 = vunpack.c.l.b16 %v572
    %v769 = vunpack.c.h.b16 %v572
    %v770 = vunpack.c.l.b16 %v573
    %v771 = vunpack.c.h.b16 %v573
    %v772 = vunpack.c.l.b16 %v574
    %v773 = vunpack.c.h.b16 %v574
    %v774 = vunpack.c.l.b16 %v575
    %v775 = vunpack.c.h.b16 %v575
    %v776 = vunpack.c.l.b16 %v576
    %v777 = vunpack.c.h.b16 %v576
    %v778 = vunpack.c.l.b16 %v577
    %v779 = vunpack.c.h.b16 %v577
    %v780 = vunpack.c.l.b16 %v578
    %v781 = vunpack.c.h.b16 %v578
    %v782 = vunpack.c.l.b16 %v579
    %v783 = vunpack.c.h.b16 %v579
    %v784 = vpack.c.b16 %v658, %v656
    %v785 = vpack.c.b16 %v659, %v657
    %v786 = vpack.c.b16 %v662, %v660
    %v787 = vpack.c.b16 %v663, %v661
    %v788 = vpack.c.b16 %v666, %v664
    %v789 = vpack.c.b16 %v667, %v665
    %v790 = vpack.c.b16 %v670, %v668
    %v791 = vpack.c.b16 %v671, %v669
    %v792 = vpack.c.b16 %v674, %v672
    %v793 = vpack.c.b16 %v675, %v673
    %v794 = vpack.c.b16 %v678, %v676
    %v795 = vpack.c.b16 %v679, %v677
    %v796 = vpack.c.b16 %v682, %v680
    %v797 = vpack.c.b16 %v683, %v681
    %v798 = vpack.c.b16 %v686, %v684
    %v799 = vpack.c.b16 %v687, %v685
    %v800 = vpack.c.b16 %v690, %v688
    %v801 = vpack.c.b16 %v691, %v689
    %v802 = vpack.c.b16 %v694, %v692
    %v803 = vpack.c.b16 %v695, %v693
    %v804 = vpack.c.b16 %v698, %v696
    %v805 = vpack.c.b16 %v699, %v697
    %v806 = vpack.c.b16 %v702, %v700
    %v807 = vpack.c.b16 %v703, %v701
    %v808 = vpack.c.b16 %v706, %v704
    %v809 = vpack.c.b16 %v707, %v705
    %v810 = vpack.c.b16 %v710, %v708
    %v811 = vpack.c.b16 %v711, %v709
    %v812 = vpack.c.b16 %v714, %v712
    %v813 = vpack.c.b16 %v715, %v713
    %v814 = vpack.c.b16 %v718, %v716
    %v815 = vpack.c.b16 %v719, %v717
    %v816 = vpack.c.b16 %v722, %v720
    %v817 = vpack.c.b16 %v723, %v721
    %v818 = vpack.c.b16 %v726, %v724
    %v819 = vpack.c.b16 %v727, %v725
    %v820 = vpack.c.b16 %v730, %v728
    %v821 = vpack.c.b16 %v731, %v729
    %v822 = vpack.c.b16 %v734, %v732
    %v823 = vpack.c.b16 %v735, %v733
    %v824 = vpack.c.b16 %v738, %v736
    %v825 = vpack.c.b16 %v739, %v737
    %v826 = vpack.c.b16 %v742, %v740
    %v827 = vpack.c.b16 %v743, %v741
    %v828 = vpack.c.b16 %v746, %v744
    %v829 = vpack.c.b16 %v747, %v745
    %v830 = vpack.c.b16 %v750, %v748
    %v831 = vpack.c.b16 %v751, %v749
    %v832 = vpack.c.b16 %v754, %v752
    %v833 = vpack.c.b16 %v755, %v753
    %v834 = vpack.c.b16 %v758, %v756
    %v835 = vpack.c.b16 %v759, %v757
    %v836 = vpack.c.b16 %v762, %v760
    %v837 = vpack.c.b16 %v763, %v761
    %v838 = vpack.c.b16 %v766, %v764
    %v839 = vpack.c.b16 %v767, %v765
    %v840 = vpack.c.b16 %v770, %v768
    %v841 = vpack.c.b16 %v771, %v769
    %v842 = vpack.c.b16 %v774, %v772
    %v843 = vpack.c.b16 %v775, %v773
    %v844 = vpack.c.b16 %v778, %v776
    %v845 = vpack.c.b16 %v779, %v777
    %v846 = vpack.c.b16 %v782, %v780
    %v847 = vpack.c.b16 %v783, %v781
    %912 = vmatprep.subr.bf16.mxu0 %v799
    %913 = vmatpush1.bf16.msra.mxu0 %v798
    %914 = vmatprep.subr.bf16.mxu0 %v797
    %915 = vmatpush1.bf16.msra.mxu0 %v796
    %916 = vmatprep.subr.bf16.mxu0 %v795
    %917 = vmatpush1.bf16.msra.mxu0 %v794
    %918 = vmatprep.subr.bf16.mxu0 %v793
    %919 = vmatpush1.bf16.msra.mxu0 %v792
    %920 = vmatprep.subr.bf16.mxu0 %v791
    %921 = vmatpush1.bf16.msra.mxu0 %v790
    %922 = vmatprep.subr.bf16.mxu0 %v789
    %923 = vmatpush1.bf16.msra.mxu0 %v788
    %924 = vmatprep.subr.bf16.mxu0 %v787
    %925 = vmatpush1.bf16.msra.mxu0 %v786
    %926 = vmatprep.subr.bf16.mxu0 %v785
    %927 = vmatpush1.bf16.msra.mxu0 %v784
    %928 = vmatprep.subr.bf16.mxu0 %v815
    %929 = vmatpush2.bf16.msra.mxu0 %v814
    %930 = vmatprep.subr.bf16.mxu0 %v813
    %931 = vmatpush2.bf16.msra.mxu0 %v812
    %932 = vmatprep.subr.bf16.mxu0 %v811
    %933 = vmatpush2.bf16.msra.mxu0 %v810
    %934 = vmatprep.subr.bf16.mxu0 %v809
    %935 = vmatpush2.bf16.msra.mxu0 %v808
    %936 = vmatprep.subr.bf16.mxu0 %v807
    %937 = vmatpush2.bf16.msra.mxu0 %v806
    %938 = vmatprep.subr.bf16.mxu0 %v805
    %939 = vmatpush2.bf16.msra.mxu0 %v804
    %940 = vmatprep.subr.bf16.mxu0 %v803
    %941 = vmatpush2.bf16.msra.mxu0 %v802
    %942 = vmatprep.subr.bf16.mxu0 %v801
    %943 = vmatpush2.bf16.msra.mxu0 %v800
    %944 = vmatprep.mubr.bf16.mxu0 %v485
    %945 = vmatmul.mubr.bf16.gmra.mxu0 %v484
    %v946 = vpop.f32.mrf.mxu0
    %v947 = vadd.f32 %v585, %v946
    %v948 = vpop.f32.mrf.mxu0
    %v949 = vadd.f32 %v589, %v948
    %v950 = vpop.f32.mrf.mxu0
    %v951 = vadd.f32 %v585, %v950
    %v952 = vpop.f32.mrf.mxu0
    %v953 = vadd.f32 %v589, %v952
    %954 = vmatprep.mubr.bf16.mxu0 %v489
    %955 = vmatmul.mubr.bf16.gmra.mxu0 %v488
    %v956 = vpop.f32.mrf.mxu0
    %v957 = vadd.f32 %v585, %v956
    %v958 = vpop.f32.mrf.mxu0
    %v959 = vadd.f32 %v589, %v958
    %v960 = vpop.f32.mrf.mxu0
    %v961 = vadd.f32 %v585, %v960
    %v962 = vpop.f32.mrf.mxu0
    %v963 = vadd.f32 %v589, %v962
    %964 = vmatprep.mubr.bf16.mxu0 %v493
    %965 = vmatmul.mubr.bf16.gmra.mxu0 %v492
    %v966 = vpop.f32.mrf.mxu0
    %v967 = vadd.f32 %v585, %v966
    %v968 = vpop.f32.mrf.mxu0
    %v969 = vadd.f32 %v589, %v968
    %v970 = vpop.f32.mrf.mxu0
    %v971 = vadd.f32 %v585, %v970
    %v972 = vpop.f32.mrf.mxu0
    %v973 = vadd.f32 %v589, %v972
    %974 = vmatprep.mubr.bf16.mxu0 %v497
    %975 = vmatmul.mubr.bf16.gmra.mxu0 %v496
    %v976 = vpop.f32.mrf.mxu0
    %v977 = vadd.f32 %v585, %v976
    %v978 = vpop.f32.mrf.mxu0
    %v979 = vadd.f32 %v589, %v978
    %v980 = vpop.f32.mrf.mxu0
    %v981 = vadd.f32 %v585, %v980
    %v982 = vpop.f32.mrf.mxu0
    %v983 = vadd.f32 %v589, %v982
    %984 = vmatprep.mubr.bf16.mxu0 %v501
    %985 = vmatmul.mubr.bf16.gmra.mxu0 %v500
    %v986 = vpop.f32.mrf.mxu0
    %v987 = vadd.f32 %v585, %v986
    %v988 = vpop.f32.mrf.mxu0
    %v989 = vadd.f32 %v589, %v988
    %v990 = vpop.f32.mrf.mxu0
    %v991 = vadd.f32 %v585, %v990
    %v992 = vpop.f32.mrf.mxu0
    %v993 = vadd.f32 %v589, %v992
    %994 = vmatprep.mubr.bf16.mxu0 %v505
    %995 = vmatmul.mubr.bf16.gmra.mxu0 %v504
    %v996 = vpop.f32.mrf.mxu0
    %v997 = vadd.f32 %v585, %v996
    %v998 = vpop.f32.mrf.mxu0
    %v999 = vadd.f32 %v589, %v998
    %v1000 = vpop.f32.mrf.mxu0
    %v1001 = vadd.f32 %v585, %v1000
    %v1002 = vpop.f32.mrf.mxu0
    %v1003 = vadd.f32 %v589, %v1002
    %1004 = vmatprep.mubr.bf16.mxu0 %v509
    %1005 = vmatmul.mubr.bf16.gmra.mxu0 %v508
    %v1006 = vpop.f32.mrf.mxu0
    %v1007 = vadd.f32 %v585, %v1006
    %v1008 = vpop.f32.mrf.mxu0
    %v1009 = vadd.f32 %v589, %v1008
    %v1010 = vpop.f32.mrf.mxu0
    %v1011 = vadd.f32 %v585, %v1010
    %v1012 = vpop.f32.mrf.mxu0
    %v1013 = vadd.f32 %v589, %v1012
    %1014 = vmatprep.mubr.bf16.mxu0 %v513
    %1015 = vmatmul.mubr.bf16.gmra.mxu0 %v512
    %v1016 = vpop.f32.mrf.mxu0
    %v1017 = vadd.f32 %v585, %v1016
    %v1018 = vpop.f32.mrf.mxu0
    %v1019 = vadd.f32 %v589, %v1018
    %v1020 = vpop.f32.mrf.mxu0
    %v1021 = vadd.f32 %v585, %v1020
    %v1022 = vpop.f32.mrf.mxu0
    %v1023 = vadd.f32 %v589, %v1022
    %1024 = vdwg.mxu0
    %1025 = vmatprep.subr.bf16.mxu0 %v831
    %1026 = vmatpush1.bf16.msra.mxu0 %v830
    %1027 = vmatprep.subr.bf16.mxu0 %v829
    %1028 = vmatpush1.bf16.msra.mxu0 %v828
    %1029 = vmatprep.subr.bf16.mxu0 %v827
    %1030 = vmatpush1.bf16.msra.mxu0 %v826
    %1031 = vmatprep.subr.bf16.mxu0 %v825
    %1032 = vmatpush1.bf16.msra.mxu0 %v824
    %1033 = vmatprep.subr.bf16.mxu0 %v823
    %1034 = vmatpush1.bf16.msra.mxu0 %v822
    %1035 = vmatprep.subr.bf16.mxu0 %v821
    %1036 = vmatpush1.bf16.msra.mxu0 %v820
    %1037 = vmatprep.subr.bf16.mxu0 %v819
    %1038 = vmatpush1.bf16.msra.mxu0 %v818
    %1039 = vmatprep.subr.bf16.mxu0 %v817
    %1040 = vmatpush1.bf16.msra.mxu0 %v816
    %1041 = vmatprep.subr.bf16.mxu0 %v847
    %1042 = vmatpush2.bf16.msra.mxu0 %v846
    %1043 = vmatprep.subr.bf16.mxu0 %v845
    %1044 = vmatpush2.bf16.msra.mxu0 %v844
    %1045 = vmatprep.subr.bf16.mxu0 %v843
    %1046 = vmatpush2.bf16.msra.mxu0 %v842
    %1047 = vmatprep.subr.bf16.mxu0 %v841
    %1048 = vmatpush2.bf16.msra.mxu0 %v840
    %1049 = vmatprep.subr.bf16.mxu0 %v839
    %1050 = vmatpush2.bf16.msra.mxu0 %v838
    %1051 = vmatprep.subr.bf16.mxu0 %v837
    %1052 = vmatpush2.bf16.msra.mxu0 %v836
    %1053 = vmatprep.subr.bf16.mxu0 %v835
    %1054 = vmatpush2.bf16.msra.mxu0 %v834
    %1055 = vmatprep.subr.bf16.mxu0 %v833
    %1056 = vmatpush2.bf16.msra.mxu0 %v832
    %1057 = vmatprep.mubr.bf16.mxu0 %v487
    %1058 = vmatmul.mubr.bf16.gmra.mxu0 %v486
    %v1059 = vpop.f32.mrf.mxu0
    %v1060 = vadd.f32 %v947, %v1059
    %v1061 = vpop.f32.mrf.mxu0
    %v1062 = vadd.f32 %v949, %v1061
    %v1063 = vpop.f32.mrf.mxu0
    %v1064 = vadd.f32 %v951, %v1063
    %v1065 = vpop.f32.mrf.mxu0
    %v1066 = vadd.f32 %v953, %v1065
    %1067 = vmatprep.mubr.bf16.mxu0 %v491
    %1068 = vmatmul.mubr.bf16.gmra.mxu0 %v490
    %v1069 = vpop.f32.mrf.mxu0
    %v1070 = vadd.f32 %v957, %v1069
    %v1071 = vpop.f32.mrf.mxu0
    %v1072 = vadd.f32 %v959, %v1071
    %v1073 = vpop.f32.mrf.mxu0
    %v1074 = vadd.f32 %v961, %v1073
    %v1075 = vpop.f32.mrf.mxu0
    %v1076 = vadd.f32 %v963, %v1075
    %1077 = vmatprep.mubr.bf16.mxu0 %v495
    %1078 = vmatmul.mubr.bf16.gmra.mxu0 %v494
    %v1079 = vpop.f32.mrf.mxu0
    %v1080 = vadd.f32 %v967, %v1079
    %v1081 = vpop.f32.mrf.mxu0
    %v1082 = vadd.f32 %v969, %v1081
    %v1083 = vpop.f32.mrf.mxu0
    %v1084 = vadd.f32 %v971, %v1083
    %v1085 = vpop.f32.mrf.mxu0
    %v1086 = vadd.f32 %v973, %v1085
    %1087 = vmatprep.mubr.bf16.mxu0 %v499
    %1088 = vmatmul.mubr.bf16.gmra.mxu0 %v498
    %v1089 = vpop.f32.mrf.mxu0
    %v1090 = vadd.f32 %v977, %v1089
    %v1091 = vpop.f32.mrf.mxu0
    %v1092 = vadd.f32 %v979, %v1091
    %v1093 = vpop.f32.mrf.mxu0
    %v1094 = vadd.f32 %v981, %v1093
    %v1095 = vpop.f32.mrf.mxu0
    %v1096 = vadd.f32 %v983, %v1095
    %1097 = vmatprep.mubr.bf16.mxu0 %v503
    %1098 = vmatmul.mubr.bf16.gmra.mxu0 %v502
    %v1099 = vpop.f32.mrf.mxu0
    %v1100 = vadd.f32 %v987, %v1099
    %v1101 = vpop.f32.mrf.mxu0
    %v1102 = vadd.f32 %v989, %v1101
    %v1103 = vpop.f32.mrf.mxu0
    %v1104 = vadd.f32 %v991, %v1103
    %v1105 = vpop.f32.mrf.mxu0
    %v1106 = vadd.f32 %v993, %v1105
    %1107 = vmatprep.mubr.bf16.mxu0 %v507
    %1108 = vmatmul.mubr.bf16.gmra.mxu0 %v506
    %v1109 = vpop.f32.mrf.mxu0
    %v1110 = vadd.f32 %v997, %v1109
    %v1111 = vpop.f32.mrf.mxu0
    %v1112 = vadd.f32 %v999, %v1111
    %v1113 = vpop.f32.mrf.mxu0
    %v1114 = vadd.f32 %v1001, %v1113
    %v1115 = vpop.f32.mrf.mxu0
    %v1116 = vadd.f32 %v1003, %v1115
    %1117 = vmatprep.mubr.bf16.mxu0 %v511
    %1118 = vmatmul.mubr.bf16.gmra.mxu0 %v510
    %v1119 = vpop.f32.mrf.mxu0
    %v1120 = vadd.f32 %v1007, %v1119
    %v1121 = vpop.f32.mrf.mxu0
    %v1122 = vadd.f32 %v1009, %v1121
    %v1123 = vpop.f32.mrf.mxu0
    %v1124 = vadd.f32 %v1011, %v1123
    %v1125 = vpop.f32.mrf.mxu0
    %v1126 = vadd.f32 %v1013, %v1125
    %1127 = vmatprep.mubr.bf16.mxu0 %v515
    %1128 = vmatmul.mubr.bf16.gmra.mxu0 %v514
    %v1129 = vpop.f32.mrf.mxu0
    %v1130 = vadd.f32 %v1017, %v1129
    %v1131 = vpop.f32.mrf.mxu0
    %v1132 = vadd.f32 %v1019, %v1131
    %v1133 = vpop.f32.mrf.mxu0
    %v1134 = vadd.f32 %v1021, %v1133
    %v1135 = vpop.f32.mrf.mxu0
    %v1136 = vadd.f32 %v1023, %v1135
    %1137 = vdwg.mxu0
    %v1138 = vmax.f32 %v1060, 0.0
    %v1139 = vmax.f32 %v1062, 0.0
    %v1140 = vmax.f32 %v1064, 0.0
    %v1141 = vmax.f32 %v1066, 0.0
    %v1142 = vmax.f32 %v1070, 0.0
    %v1143 = vmax.f32 %v1072, 0.0
    %v1144 = vmax.f32 %v1074, 0.0
    %v1145 = vmax.f32 %v1076, 0.0
    %v1146 = vmax.f32 %v1080, 0.0
    %v1147 = vmax.f32 %v1082, 0.0
    %v1148 = vmax.f32 %v1084, 0.0
    %v1149 = vmax.f32 %v1086, 0.0
    %v1150 = vmax.f32 %v1090, 0.0
    %v1151 = vmax.f32 %v1092, 0.0
    %v1152 = vmax.f32 %v1094, 0.0
    %v1153 = vmax.f32 %v1096, 0.0
    %v1154 = vmax.f32 %v1100, 0.0
    %v1155 = vmax.f32 %v1102, 0.0
    %v1156 = vmax.f32 %v1104, 0.0
    %v1157 = vmax.f32 %v1106, 0.0
    %v1158 = vmax.f32 %v1110, 0.0
    %v1159 = vmax.f32 %v1112, 0.0
    %v1160 = vmax.f32 %v1114, 0.0
    %v1161 = vmax.f32 %v1116, 0.0
    %v1162 = vmax.f32 %v1120, 0.0
    %v1163 = vmax.f32 %v1122, 0.0
    %v1164 = vmax.f32 %v1124, 0.0
    %v1165 = vmax.f32 %v1126, 0.0
    %v1166 = vmax.f32 %v1130, 0.0
    %v1167 = vmax.f32 %v1132, 0.0
    %v1168 = vmax.f32 %v1134, 0.0
    %v1169 = vmax.f32 %v1136, 0.0
    %v1170 = vld [vmem:[%s5] sm:$0x3]
    %v1172 = vlaneseq
    %v1173 = vshrl.u32 %v1172, 7
    %v1174 = vsub.s32 0, %v1173
    %v1175 = vrot.slane %v1170, %v1174
    %v1176 = vlaneseq
    %v1177 = vshrl.u32 %v1176, 7
    %v1178 = vsub.s32 1, %v1177
    %v1179 = vrot.slane %v1170, %v1178
    %v1182 = vmul.f32 %v1138, %v1175
    %v1183 = vmul.f32 %v1139, %v1179
    %v1184 = vmul.f32 %v1140, %v1175
    %v1185 = vmul.f32 %v1141, %v1179
    %v1186 = vmul.f32 %v1142, %v1175
    %v1187 = vmul.f32 %v1143, %v1179
    %v1188 = vmul.f32 %v1144, %v1175
    %v1189 = vmul.f32 %v1145, %v1179
    %v1190 = vmul.f32 %v1146, %v1175
    %v1191 = vmul.f32 %v1147, %v1179
    %v1192 = vmul.f32 %v1148, %v1175
    %v1193 = vmul.f32 %v1149, %v1179
    %v1194 = vmul.f32 %v1150, %v1175
    %v1195 = vmul.f32 %v1151, %v1179
    %v1196 = vmul.f32 %v1152, %v1175
    %v1197 = vmul.f32 %v1153, %v1179
    %v1198 = vmul.f32 %v1154, %v1175
    %v1199 = vmul.f32 %v1155, %v1179
    %v1200 = vmul.f32 %v1156, %v1175
    %v1201 = vmul.f32 %v1157, %v1179
    %v1202 = vmul.f32 %v1158, %v1175
    %v1203 = vmul.f32 %v1159, %v1179
    %v1204 = vmul.f32 %v1160, %v1175
    %v1205 = vmul.f32 %v1161, %v1179
    %v1206 = vmul.f32 %v1162, %v1175
    %v1207 = vmul.f32 %v1163, %v1179
    %v1208 = vmul.f32 %v1164, %v1175
    %v1209 = vmul.f32 %v1165, %v1179
    %v1210 = vmul.f32 %v1166, %v1175
    %v1211 = vmul.f32 %v1167, %v1179
    %v1212 = vmul.f32 %v1168, %v1175
    %v1213 = vmul.f32 %v1169, %v1179
    %v1214 = vadd.f32 %v1182, %v1183
    %1215 = vadd.xlane.f32.xlu0 %v1214
    %v1216 = vpop.xlane.xlu0 %1215
    %v1217 = vadd.f32 %v1184, %v1185
    %1218 = vadd.xlane.f32.xlu0 %v1217
    %v1219 = vpop.xlane.xlu0 %1218
    %v1220 = vadd.f32 %v1186, %v1187
    %1221 = vadd.xlane.f32.xlu0 %v1220
    %v1222 = vpop.xlane.xlu0 %1221
    %v1223 = vadd.f32 %v1188, %v1189
    %1224 = vadd.xlane.f32.xlu0 %v1223
    %v1225 = vpop.xlane.xlu0 %1224
    %v1226 = vadd.f32 %v1190, %v1191
    %1227 = vadd.xlane.f32.xlu0 %v1226
    %v1228 = vpop.xlane.xlu0 %1227
    %v1229 = vadd.f32 %v1192, %v1193
    %1230 = vadd.xlane.f32.xlu0 %v1229
    %v1231 = vpop.xlane.xlu0 %1230
    %v1232 = vadd.f32 %v1194, %v1195
    %1233 = vadd.xlane.f32.xlu0 %v1232
    %v1234 = vpop.xlane.xlu0 %1233
    %v1235 = vadd.f32 %v1196, %v1197
    %1236 = vadd.xlane.f32.xlu0 %v1235
    %v1237 = vpop.xlane.xlu0 %1236
    %v1238 = vadd.f32 %v1198, %v1199
    %1239 = vadd.xlane.f32.xlu0 %v1238
    %v1240 = vpop.xlane.xlu0 %1239
    %v1241 = vadd.f32 %v1200, %v1201
    %1242 = vadd.xlane.f32.xlu0 %v1241
    %v1243 = vpop.xlane.xlu0 %1242
    %v1244 = vadd.f32 %v1202, %v1203
    %1245 = vadd.xlane.f32.xlu0 %v1244
    %v1246 = vpop.xlane.xlu0 %1245
    %v1247 = vadd.f32 %v1204, %v1205
    %1248 = vadd.xlane.f32.xlu0 %v1247
    %v1249 = vpop.xlane.xlu0 %1248
    %v1250 = vadd.f32 %v1206, %v1207
    %1251 = vadd.xlane.f32.xlu0 %v1250
    %v1252 = vpop.xlane.xlu0 %1251
    %v1253 = vadd.f32 %v1208, %v1209
    %1254 = vadd.xlane.f32.xlu0 %v1253
    %v1255 = vpop.xlane.xlu0 %1254
    %v1256 = vadd.f32 %v1210, %v1211
    %1257 = vadd.xlane.f32.xlu0 %v1256
    %v1258 = vpop.xlane.xlu0 %1257
    %v1259 = vadd.f32 %v1212, %v1213
    %1260 = vadd.xlane.f32.xlu0 %v1259
    %v1261 = vpop.xlane.xlu0 %1260
    %s1262 = sld [smem:[#allocation2]]
    %v1263 = vstv %s1262
    %v1264 = vadd.f32 %v1216, %v1263
    %v1265 = vadd.f32 %v1219, %v1263
    %v1266 = vadd.f32 %v1222, %v1263
    %v1267 = vadd.f32 %v1225, %v1263
    %v1268 = vadd.f32 %v1228, %v1263
    %v1269 = vadd.f32 %v1231, %v1263
    %v1270 = vadd.f32 %v1234, %v1263
    %v1271 = vadd.f32 %v1237, %v1263
    %v1272 = vadd.f32 %v1240, %v1263
    %v1273 = vadd.f32 %v1243, %v1263
    %v1274 = vadd.f32 %v1246, %v1263
    %v1275 = vadd.f32 %v1249, %v1263
    %v1276 = vadd.f32 %v1252, %v1263
    %v1277 = vadd.f32 %v1255, %v1263
    %v1278 = vadd.f32 %v1258, %v1263
    %v1279 = vadd.f32 %v1261, %v1263
    %vm1280 = vcmask 7168
    %1281 = vst.msk [vmem:[%s7] sm:$0xff] %vm1280, %v1264
    %1282 = vst.msk [vmem:[%s7 + $0x8] sm:$0xff] %vm1280, %v1265
    %1283 = vst.msk [vmem:[%s7 + $0x10] sm:$0xff] %vm1280, %v1266
    %1284 = vst.msk [vmem:[%s7 + $0x18] sm:$0xff] %vm1280, %v1267
    %1285 = vst.msk [vmem:[%s7 + $0x20] sm:$0xff] %vm1280, %v1268
    %1286 = vst.msk [vmem:[%s7 + $0x28] sm:$0xff] %vm1280, %v1269
    %1287 = vst.msk [vmem:[%s7 + $0x30] sm:$0xff] %vm1280, %v1270
    %1288 = vst.msk [vmem:[%s7 + $0x38] sm:$0xff] %vm1280, %v1271
    %1289 = vst.msk [vmem:[%s7 + $0x40] sm:$0xff] %vm1280, %v1272
    %1290 = vst.msk [vmem:[%s7 + $0x48] sm:$0xff] %vm1280, %v1273
    %1291 = vst.msk [vmem:[%s7 + $0x50] sm:$0xff] %vm1280, %v1274
    %1292 = vst.msk [vmem:[%s7 + $0x58] sm:$0xff] %vm1280, %v1275
    %1293 = vst.msk [vmem:[%s7 + $0x60] sm:$0xff] %vm1280, %v1276
    %1294 = vst.msk [vmem:[%s7 + $0x68] sm:$0xff] %vm1280, %v1277
    %1295 = vst.msk [vmem:[%s7 + $0x70] sm:$0xff] %vm1280, %v1278
    %1296 = vst.msk [vmem:[%s7 + $0x78] sm:$0xff] %vm1280, %v1279
    // Predicated region
    $region34: #{critic_forward.1} parent=1 // pred_check
      _
    $region35: #{critic_forward.1} parent=1 // pred_check_branch
      %1298 = sbr.rel (0) target = $region37
    $region36: #{critic_forward.1} parent=1 // pred_region
      _
    $region37: #{critic_forward.1} parent=1 // pred_fallthru
      _
    // Predicated region
    $region38: #{critic_forward.1} parent=1 // pred_check
      _
    $region39: #{critic_forward.1} parent=1 // pred_check_branch
      %1300 = sbr.rel (0) target = $region41
    $region40: #{critic_forward.1} parent=1 // pred_region
      _
    $region41: #{critic_forward.1} parent=1 // pred_fallthru
      _
    %1301 = vsyncpa [#allocation4], 1

</llo_original>
